<compile_context>
chip_gen: v6e
topology: v6e:2x2x1
jax: 0.10.0
libtpu: 0.0.40
codegen_flags: <defaults>
</compile_context>

<pallas_src>
import numpy as np
import jax
import jax.numpy as jnp
from jax import lax
from jax.experimental import pallas as pl
from jax.experimental.pallas import tpu as pltpu

_LANE = 128


def _sh_basis_constants(level=2):
    """A_l * K(l,m) factors of torch_SH_renderer.gen_sh(isRender=True) with the
    gen_Y / associated-Legendre signs folded in, so that
      sh_k(n) = const_k * poly_k(n),
    poly order: [1, nx, ny, nz, nx*nz, nx*ny, 3ny^2-1, ny*nz, nz^2-nx^2]."""
    assert level == 2  # TODO(synk): closed-form basis only implemented for level=2 (module default).
    pi = np.pi
    fact = np.array([1.0, 1.0, 2.0, 6.0, 24.0])          # factorial table (as in the module)

    def K(l, m):
        return np.sqrt((2.0 * l + 1.0) * fact[l - m] / (4.0 * pi * fact[l + m]))

    A0, A1, A2 = pi, 2.0 * pi / 3.0, pi / 4.0            # gen_A(0), gen_A(1), gen_A(2)
    s2 = np.sqrt(2.0)
    return np.array([
        A0 * K(0, 0),              # l=0, m= 0 :  1
        -A1 * s2 * K(1, 1),        # l=1, m=-1 :  nx
        -A1 * K(1, 0),             # l=1, m= 0 :  ny
        -A1 * s2 * K(1, 1),        # l=1, m=+1 :  nz
        -6.0 * A2 * s2 * K(2, 2),  # l=2, m=-2 :  nx*nz
        3.0 * A2 * s2 * K(2, 1),   # l=2, m=-1 :  nx*ny
        0.5 * A2 * K(2, 0),        # l=2, m= 0 :  3*ny^2 - 1
        3.0 * A2 * s2 * K(2, 1),   # l=2, m=+1 :  ny*nz
        3.0 * A2 * s2 * K(2, 2),   # l=2, m=+2 :  nz^2 - nx^2
    ], dtype=np.float32)


def _make_sh_kernel(has_albedo):
    """Builds the kernel body; compile-time specialization on albedo presence."""

    def kernel(coeff_ref, norm_ref, *rest):
        # coeff_ref : SMEM (B, 27)  per-batch [c*9 + k] coefficients; A_l*K_lm signs
        #             and the final 0.5 already folded in (scalar-prefetch input).
        # norm_ref  : VMEM (1, 3, tile_r, 128) raw NCHW normal tile in [0, 1], native dtype.
        # alb_ref   : (optional) VMEM (1, 3, tile_r, 128) albedo tile, native dtype.
        # out_ref   : VMEM (1, 3, tile_r, 128) diffuse tile, input dtype.
        if has_albedo:
            alb_ref, out_ref = rest
        else:
            out_ref, = rest
        b = pl.program_id(0)

        # torch.flip(normal, [1])  ==  read the channel planes in reverse order (free).
        # Cast to f32 on load; all arithmetic stays f32 (safe on v5e with bf16 inputs).
        nx = (norm_ref[0, 2].astype(jnp.float32) - 0.5) * 2.0
        ny = (norm_ref[0, 1].astype(jnp.float32) - 0.5) * 2.0
        nz = (norm_ref[0, 0].astype(jnp.float32) - 0.5) * 2.0

        # F.normalize(p=2, dim=1), eps = 1e-12  (guard squared norm with eps^2).
        sumsq = nx * nx + ny * ny + nz * nz
        inv = lax.rsqrt(jnp.maximum(sumsq, 1e-24))       # one EUP op, own VLIW slot
        nx = nx * inv
        ny = ny * inv
        nz = nz * inv

        # Level-2 SH basis polynomials (constants live in coeff_ref), k = l*(l+1)+m order.
        p4 = nx * nz
        p5 = nx * ny
        p6 = 3.0 * ny * ny - 1.0
        p7 = ny * nz
        p8 = nz * nz - nx * nx
        basis = (nx, ny, nz, p4, p5, p6, p7, p8)          # k = 1 .. 8 (k = 0 is the DC term)

        # Each basis value feeds all 3 channel accumulators before moving on,
        # so the big temporaries are reused rather than re-streamed per channel.
        accs = [None, None, None]
        for k, pk in enumerate(basis, start=1):
            for c in range(3):
                term = coeff_ref[b, c * 9 + k] * pk
                accs[c] = term if accs[c] is None else accs[c] + term

        for c in range(3):
            val = accs[c] + coeff_ref[b, c * 9]           # add DC term (scalar broadcast)
            if has_albedo:
                val = val * alb_ref[0, c].astype(jnp.float32)
            out_ref[0, c] = val.astype(out_ref.dtype)

    return kernel


def _to_lane_dense(img, B, P, R, P_pad):
    """(B,3,H,W) -> (B,3,R,128) lane-dense view; reshape is free when P%128==0."""
    x = img.reshape(B, 3, P)
    if P_pad != P:
        # Rare: pad the pixel axis up to a lane multiple (keeps native dtype).
        x = jnp.pad(x, ((0, 0), (0, 0), (0, P_pad - P)))
    return x.reshape(B, 3, R, _LANE)


def sh_renderer_forward(normal, sh_coeff, albedo=None, *, level=2,
                        tile_p=131072, out_dtype=None):
    """Pallas TPU forward of torch_SH_renderer (level=2).

    normal:   (B, 3, H, W) raw normal map in [0, 1]  (NCHW, like the torch module),
              f32 or bf16 — streamed in its native dtype, cast to f32 per-tile.
    sh_coeff: (B, 27) or (B, 9, 3) SH coefficients.
    albedo:   optional (B, 3, H, W); the multiply is fused into the kernel.
    returns:  (B, 3, H, W) = 0.5 * diffuse (* albedo if given), in `out_dtype`
              (defaults to normal.dtype).
    """
    assert level == 2  # TODO(synk): generic level would need a generic basis evaluator.
    B, C, H, W = normal.shape
    assert C == 3
    if out_dtype is None:
        out_dtype = normal.dtype

    P = H * W
    R = pl.cdiv(P, _LANE)
    P_pad = R * _LANE

    x = _to_lane_dense(normal, B, P, R, P_pad)
    operands = [x]
    if albedo is not None:
        operands.append(_to_lane_dense(albedo, B, P, R, P_pad))

    # Hoist all constant-per-batch work out of the kernel: fold A_l*K_lm signs and
    # the final 0.5 into a (B, 27) table, indexed [c*9 + k] inside the kernel.
    const = jnp.asarray(0.5 * _sh_basis_constants(level))                 # (9,)
    coeff = jnp.reshape(sh_coeff, (B, -1, 3)).astype(jnp.float32)         # (B, 9, 3)
    coeff_flat = (jnp.transpose(coeff, (0, 2, 1)) * const[None, None, :]).reshape(B, 27)

    # Tile selection: default tile_r = 1024 rows (~128K pixels, ~1.5 MiB f32 per
    # tensor per step) — amortizes per-step overhead while staying well inside
    # scoped VMEM even on v7x (64 MiB physical).
    tile_r = max(8, tile_p // _LANE)
    if B == 1:
        # Ensure >= 2 "parallel" grid steps so v7x's second TensorCore gets work.
        half = max(8, ((pl.cdiv(R, 2) + 7) // 8) * 8)
        tile_r = min(tile_r, half)
    if tile_r >= R:
        tile_r = R                                    # full extent: always a legal block dim
    else:
        tile_r = max(8, (tile_r // 8) * 8)            # keep the sublane dim 8-aligned when tiling
    grid = (B, pl.cdiv(R, tile_r))                    # padded tail tile if R % tile_r != 0

    block = (1, 3, tile_r, _LANE)
    idx_map = lambda b, r, coeff: (b, 0, r, 0)
    in_specs = [pl.BlockSpec(block, idx_map)]
    if albedo is not None:
        in_specs.append(pl.BlockSpec(block, idx_map))

    out = pl.pallas_call(
        _make_sh_kernel(albedo is not None),
        out_shape=jax.ShapeDtypeStruct((B, 3, R, _LANE), out_dtype),
        grid_spec=pltpu.PrefetchScalarGridSpec(
            num_scalar_prefetch=1,                    # coeff_flat -> SMEM
            grid=grid,
            in_specs=in_specs,
            out_specs=pl.BlockSpec(block, idx_map),
        ),
        compiler_params=pltpu.CompilerParams(
            dimension_semantics=("parallel", "parallel"),
            # Double-buffered blocks + elementwise temporaries stay well under this;
            # leaves headroom on v7x's 64 MiB physical VMEM, raises v5e's 16 MiB default.
            vmem_limit_bytes=48 * 1024 * 1024,
        ),
    )(coeff_flat, *operands)

    diffuse = out.reshape(B, 3, P_pad)
    if P_pad != P:
        diffuse = diffuse[:, :, :P]
    return diffuse.reshape(B, 3, H, W)


def reference_forward(normal, sh_coeff, albedo=None):
    """Pure-JAX mirror of torch_SH_renderer.forward (level=2): trig + recursive
    Legendre path, used only to validate the kernel."""
    B = normal.shape[0]
    n = normal[:, ::-1].astype(jnp.float32)            # torch.flip(normal, [1])
    n = (n - 0.5) * 2.0
    norm = jnp.sqrt(jnp.sum(n * n, axis=1, keepdims=True))
    n = n / jnp.maximum(norm, 1e-12)                   # F.normalize(p=2, dim=1)
    theta = jnp.arccos(-n[:, 1])
    phi = jnp.arctan2(n[:, 0], -n[:, 2])
    phi = jnp.where(phi < 0, phi + 2.0 * np.pi, phi)

    x = jnp.cos(theta)
    s = jnp.sqrt(1.0 - x * x)
    pi = np.pi
    fact = np.array([1.0, 1.0, 2.0, 6.0, 24.0])
    K = lambda l, m: np.sqrt((2.0 * l + 1.0) * fact[l - m] / (4.0 * pi * fact[l + m]))
    A0, A1, A2 = pi, 2.0 * pi / 3.0, pi / 4.0
    s2 = np.sqrt(2.0)
    P11 = -s
    P21 = 3.0 * x * P11
    P22 = 3.0 * (1.0 - x * x)
    P20 = (3.0 * x * x - 1.0) / 2.0
    sh = jnp.stack([
        A0 * K(0, 0) * jnp.ones_like(x),
        A1 * s2 * K(1, 1) * jnp.sin(phi) * P11,
        A1 * K(1, 0) * x,
        A1 * (-1.0) * s2 * K(1, 1) * jnp.cos(phi) * P11,
        A2 * s2 * K(2, 2) * jnp.sin(2.0 * phi) * P22,
        A2 * s2 * K(2, 1) * jnp.sin(phi) * P21,
        A2 * K(2, 0) * P20,
        A2 * (-1.0) * s2 * K(2, 1) * jnp.cos(phi) * P21,
        A2 * s2 * K(2, 2) * jnp.cos(2.0 * phi) * P22,
    ], axis=1)                                          # (B, 9, H, W)
    coeff = jnp.reshape(sh_coeff, (B, -1, 3)).astype(jnp.float32)
    diffuse = jnp.sum(coeff[:, :, :, None, None] * sh[:, :, None, :, :], axis=1)
    if albedo is not None:
        diffuse = diffuse * albedo.astype(jnp.float32)
    return diffuse * 0.5


if __name__ == "__main__":
    batch, H, W, level = 2, 16, 16, 2
    key = jax.random.PRNGKey(0)
    k_n, k_c, k_a = jax.random.split(key, 3)
    normal = jax.random.uniform(k_n, (batch, 3, H, W), dtype=jnp.float32)          # raw [0,1] normals, NCHW
    sh_coeff = jax.random.normal(k_c, (batch, (level + 1) ** 2 * 3), dtype=jnp.float32)
    albedo = jax.random.uniform(k_a, (batch, 3, H, W), dtype=jnp.float32)

    # No albedo.
    out = jax.block_until_ready(sh_renderer_forward(normal, sh_coeff))
    assert out.shape == (batch, 3, H, W)
    ref = reference_forward(normal, sh_coeff)
    np.testing.assert_allclose(np.asarray(out), np.asarray(ref), rtol=2e-4, atol=2e-4)

    # Fused albedo.
    out_a = jax.block_until_ready(sh_renderer_forward(normal, sh_coeff, albedo))
    ref_a = reference_forward(normal, sh_coeff, albedo)
    np.testing.assert_allclose(np.asarray(out_a), np.asarray(ref_a), rtol=2e-4, atol=2e-4)

    # bf16 I/O smoke test (native-dtype streaming path; compute stays f32 in-kernel).
    out_bf = jax.block_until_ready(
        sh_renderer_forward(normal.astype(jnp.bfloat16), sh_coeff,
                            albedo.astype(jnp.bfloat16)))
    assert out_bf.shape == (batch, 3, H, W) and out_bf.dtype == jnp.bfloat16
    assert bool(jnp.all(jnp.isfinite(out_bf.astype(jnp.float32))))

    print("KERNEL_OK")
</pallas_src>

<mosaic_0001>
module attributes {stable_mosaic.version = 11 : i64} {
  func.func @kernel(%arg0: i32, %arg1: i32, %arg2: memref<2x27xf32, #tpu.memory_space<smem>>, %arg3: memref<1x3x2x128xf32, #tpu.memory_space<vmem>>, %arg4: memref<1x3x2x128xf32, #tpu.memory_space<vmem>>) attributes {dimension_semantics = [#tpu.dimension_semantics<parallel>, #tpu.dimension_semantics<parallel>], iteration_bounds = array<i64: 2, 1>, scalar_prefetch = 1 : i64, scratch_operands = 0 : i64, tpu.core_type = #tpu.core_type<tc>, window_params = [{transform_indices = @transform_0, window_bounds = array<i64: 1, 3, 2, 128>}, {transform_indices = @transform_1, window_bounds = array<i64: 1, 3, 2, 128>}]} {
    %c0 = arith.constant 0 : index
    %c2 = arith.constant 2 : index
    %c0_0 = arith.constant 0 : index
    %c0_1 = arith.constant 0 : index
    %0 = vector.load %arg3[%c0, %c2, %c0_0, %c0_1] : memref<1x3x2x128xf32, #tpu.memory_space<vmem>>, vector<1x1x2x128xf32>
    %1 = vector.shape_cast %0 : vector<1x1x2x128xf32> to vector<2x128xf32>
    %cst = arith.constant 5.000000e-01 : f32
    %2 = vector.broadcast %cst : f32 to vector<2x128xf32>
    %3 = arith.subf %1, %2 : vector<2x128xf32>
    %cst_2 = arith.constant 2.000000e+00 : f32
    %4 = vector.broadcast %cst_2 : f32 to vector<2x128xf32>
    %5 = arith.mulf %3, %4 : vector<2x128xf32>
    %c0_3 = arith.constant 0 : index
    %c1 = arith.constant 1 : index
    %c0_4 = arith.constant 0 : index
    %c0_5 = arith.constant 0 : index
    %6 = vector.load %arg3[%c0_3, %c1, %c0_4, %c0_5] : memref<1x3x2x128xf32, #tpu.memory_space<vmem>>, vector<1x1x2x128xf32>
    %7 = vector.shape_cast %6 : vector<1x1x2x128xf32> to vector<2x128xf32>
    %cst_6 = arith.constant 5.000000e-01 : f32
    %8 = vector.broadcast %cst_6 : f32 to vector<2x128xf32>
    %9 = arith.subf %7, %8 : vector<2x128xf32>
    %cst_7 = arith.constant 2.000000e+00 : f32
    %10 = vector.broadcast %cst_7 : f32 to vector<2x128xf32>
    %11 = arith.mulf %9, %10 : vector<2x128xf32>
    %c0_8 = arith.constant 0 : index
    %c0_9 = arith.constant 0 : index
    %c0_10 = arith.constant 0 : index
    %c0_11 = arith.constant 0 : index
    %12 = vector.load %arg3[%c0_8, %c0_9, %c0_10, %c0_11] : memref<1x3x2x128xf32, #tpu.memory_space<vmem>>, vector<1x1x2x128xf32>
    %13 = vector.shape_cast %12 : vector<1x1x2x128xf32> to vector<2x128xf32>
    %cst_12 = arith.constant 5.000000e-01 : f32
    %14 = vector.broadcast %cst_12 : f32 to vector<2x128xf32>
    %15 = arith.subf %13, %14 : vector<2x128xf32>
    %cst_13 = arith.constant 2.000000e+00 : f32
    %16 = vector.broadcast %cst_13 : f32 to vector<2x128xf32>
    %17 = arith.mulf %15, %16 : vector<2x128xf32>
    %18 = arith.mulf %5, %5 : vector<2x128xf32>
    %19 = arith.mulf %11, %11 : vector<2x128xf32>
    %20 = arith.addf %18, %19 : vector<2x128xf32>
    %21 = arith.mulf %17, %17 : vector<2x128xf32>
    %22 = arith.addf %20, %21 : vector<2x128xf32>
    %cst_14 = arith.constant 1.000000e-24 : f32
    %23 = vector.broadcast %cst_14 : f32 to vector<2x128xf32>
    %24 = arith.maximumf %22, %23 : vector<2x128xf32>
    %25 = math.rsqrt %24 : vector<2x128xf32>
    %26 = arith.mulf %5, %25 : vector<2x128xf32>
    %27 = arith.mulf %11, %25 : vector<2x128xf32>
    %28 = arith.mulf %17, %25 : vector<2x128xf32>
    %29 = arith.mulf %26, %28 : vector<2x128xf32>
    %30 = arith.mulf %26, %27 : vector<2x128xf32>
    %cst_15 = arith.constant 3.000000e+00 : f32
    %31 = vector.broadcast %cst_15 : f32 to vector<2x128xf32>
    %32 = arith.mulf %31, %27 : vector<2x128xf32>
    %33 = arith.mulf %32, %27 : vector<2x128xf32>
    %cst_16 = arith.constant 1.000000e+00 : f32
    %34 = vector.broadcast %cst_16 : f32 to vector<2x128xf32>
    %35 = arith.subf %33, %34 : vector<2x128xf32>
    %36 = arith.mulf %27, %28 : vector<2x128xf32>
    %37 = arith.mulf %28, %28 : vector<2x128xf32>
    %38 = arith.mulf %26, %26 : vector<2x128xf32>
    %39 = arith.subf %37, %38 : vector<2x128xf32>
    %40 = arith.index_cast %arg0 : i32 to index
    %c1_17 = arith.constant 1 : index
    %41 = memref.load %arg2[%40, %c1_17] : memref<2x27xf32, #tpu.memory_space<smem>>
    %42 = vector.broadcast %41 : f32 to vector<2x128xf32>
    %43 = arith.mulf %42, %26 : vector<2x128xf32>
    %44 = arith.index_cast %arg0 : i32 to index
    %c10 = arith.constant 10 : index
    %45 = memref.load %arg2[%44, %c10] : memref<2x27xf32, #tpu.memory_space<smem>>
    %46 = vector.broadcast %45 : f32 to vector<2x128xf32>
    %47 = arith.mulf %46, %26 : vector<2x128xf32>
    %48 = arith.index_cast %arg0 : i32 to index
    %c19 = arith.constant 19 : index
    %49 = memref.load %arg2[%48, %c19] : memref<2x27xf32, #tpu.memory_space<smem>>
    %50 = vector.broadcast %49 : f32 to vector<2x128xf32>
    %51 = arith.mulf %50, %26 : vector<2x128xf32>
    %52 = arith.index_cast %arg0 : i32 to index
    %c2_18 = arith.constant 2 : index
    %53 = memref.load %arg2[%52, %c2_18] : memref<2x27xf32, #tpu.memory_space<smem>>
    %54 = vector.broadcast %53 : f32 to vector<2x128xf32>
    %55 = arith.mulf %54, %27 : vector<2x128xf32>
    %56 = arith.addf %43, %55 : vector<2x128xf32>
    %57 = arith.index_cast %arg0 : i32 to index
    %c11 = arith.constant 11 : index
    %58 = memref.load %arg2[%57, %c11] : memref<2x27xf32, #tpu.memory_space<smem>>
    %59 = vector.broadcast %58 : f32 to vector<2x128xf32>
    %60 = arith.mulf %59, %27 : vector<2x128xf32>
    %61 = arith.addf %47, %60 : vector<2x128xf32>
    %62 = arith.index_cast %arg0 : i32 to index
    %c20 = arith.constant 20 : index
    %63 = memref.load %arg2[%62, %c20] : memref<2x27xf32, #tpu.memory_space<smem>>
    %64 = vector.broadcast %63 : f32 to vector<2x128xf32>
    %65 = arith.mulf %64, %27 : vector<2x128xf32>
    %66 = arith.addf %51, %65 : vector<2x128xf32>
    %67 = arith.index_cast %arg0 : i32 to index
    %c3 = arith.constant 3 : index
    %68 = memref.load %arg2[%67, %c3] : memref<2x27xf32, #tpu.memory_space<smem>>
    %69 = vector.broadcast %68 : f32 to vector<2x128xf32>
    %70 = arith.mulf %69, %28 : vector<2x128xf32>
    %71 = arith.addf %56, %70 : vector<2x128xf32>
    %72 = arith.index_cast %arg0 : i32 to index
    %c12 = arith.constant 12 : index
    %73 = memref.load %arg2[%72, %c12] : memref<2x27xf32, #tpu.memory_space<smem>>
    %74 = vector.broadcast %73 : f32 to vector<2x128xf32>
    %75 = arith.mulf %74, %28 : vector<2x128xf32>
    %76 = arith.addf %61, %75 : vector<2x128xf32>
    %77 = arith.index_cast %arg0 : i32 to index
    %c21 = arith.constant 21 : index
    %78 = memref.load %arg2[%77, %c21] : memref<2x27xf32, #tpu.memory_space<smem>>
    %79 = vector.broadcast %78 : f32 to vector<2x128xf32>
    %80 = arith.mulf %79, %28 : vector<2x128xf32>
    %81 = arith.addf %66, %80 : vector<2x128xf32>
    %82 = arith.index_cast %arg0 : i32 to index
    %c4 = arith.constant 4 : index
    %83 = memref.load %arg2[%82, %c4] : memref<2x27xf32, #tpu.memory_space<smem>>
    %84 = vector.broadcast %83 : f32 to vector<2x128xf32>
    %85 = arith.mulf %84, %29 : vector<2x128xf32>
    %86 = arith.addf %71, %85 : vector<2x128xf32>
    %87 = arith.index_cast %arg0 : i32 to index
    %c13 = arith.constant 13 : index
    %88 = memref.load %arg2[%87, %c13] : memref<2x27xf32, #tpu.memory_space<smem>>
    %89 = vector.broadcast %88 : f32 to vector<2x128xf32>
    %90 = arith.mulf %89, %29 : vector<2x128xf32>
    %91 = arith.addf %76, %90 : vector<2x128xf32>
    %92 = arith.index_cast %arg0 : i32 to index
    %c22 = arith.constant 22 : index
    %93 = memref.load %arg2[%92, %c22] : memref<2x27xf32, #tpu.memory_space<smem>>
    %94 = vector.broadcast %93 : f32 to vector<2x128xf32>
    %95 = arith.mulf %94, %29 : vector<2x128xf32>
    %96 = arith.addf %81, %95 : vector<2x128xf32>
    %97 = arith.index_cast %arg0 : i32 to index
    %c5 = arith.constant 5 : index
    %98 = memref.load %arg2[%97, %c5] : memref<2x27xf32, #tpu.memory_space<smem>>
    %99 = vector.broadcast %98 : f32 to vector<2x128xf32>
    %100 = arith.mulf %99, %30 : vector<2x128xf32>
    %101 = arith.addf %86, %100 : vector<2x128xf32>
    %102 = arith.index_cast %arg0 : i32 to index
    %c14 = arith.constant 14 : index
    %103 = memref.load %arg2[%102, %c14] : memref<2x27xf32, #tpu.memory_space<smem>>
    %104 = vector.broadcast %103 : f32 to vector<2x128xf32>
    %105 = arith.mulf %104, %30 : vector<2x128xf32>
    %106 = arith.addf %91, %105 : vector<2x128xf32>
    %107 = arith.index_cast %arg0 : i32 to index
    %c23 = arith.constant 23 : index
    %108 = memref.load %arg2[%107, %c23] : memref<2x27xf32, #tpu.memory_space<smem>>
    %109 = vector.broadcast %108 : f32 to vector<2x128xf32>
    %110 = arith.mulf %109, %30 : vector<2x128xf32>
    %111 = arith.addf %96, %110 : vector<2x128xf32>
    %112 = arith.index_cast %arg0 : i32 to index
    %c6 = arith.constant 6 : index
    %113 = memref.load %arg2[%112, %c6] : memref<2x27xf32, #tpu.memory_space<smem>>
    %114 = vector.broadcast %113 : f32 to vector<2x128xf32>
    %115 = arith.mulf %114, %35 : vector<2x128xf32>
    %116 = arith.addf %101, %115 : vector<2x128xf32>
    %117 = arith.index_cast %arg0 : i32 to index
    %c15 = arith.constant 15 : index
    %118 = memref.load %arg2[%117, %c15] : memref<2x27xf32, #tpu.memory_space<smem>>
    %119 = vector.broadcast %118 : f32 to vector<2x128xf32>
    %120 = arith.mulf %119, %35 : vector<2x128xf32>
    %121 = arith.addf %106, %120 : vector<2x128xf32>
    %122 = arith.index_cast %arg0 : i32 to index
    %c24 = arith.constant 24 : index
    %123 = memref.load %arg2[%122, %c24] : memref<2x27xf32, #tpu.memory_space<smem>>
    %124 = vector.broadcast %123 : f32 to vector<2x128xf32>
    %125 = arith.mulf %124, %35 : vector<2x128xf32>
    %126 = arith.addf %111, %125 : vector<2x128xf32>
    %127 = arith.index_cast %arg0 : i32 to index
    %c7 = arith.constant 7 : index
    %128 = memref.load %arg2[%127, %c7] : memref<2x27xf32, #tpu.memory_space<smem>>
    %129 = vector.broadcast %128 : f32 to vector<2x128xf32>
    %130 = arith.mulf %129, %36 : vector<2x128xf32>
    %131 = arith.addf %116, %130 : vector<2x128xf32>
    %132 = arith.index_cast %arg0 : i32 to index
    %c16 = arith.constant 16 : index
    %133 = memref.load %arg2[%132, %c16] : memref<2x27xf32, #tpu.memory_space<smem>>
    %134 = vector.broadcast %133 : f32 to vector<2x128xf32>
    %135 = arith.mulf %134, %36 : vector<2x128xf32>
    %136 = arith.addf %121, %135 : vector<2x128xf32>
    %137 = arith.index_cast %arg0 : i32 to index
    %c25 = arith.constant 25 : index
    %138 = memref.load %arg2[%137, %c25] : memref<2x27xf32, #tpu.memory_space<smem>>
    %139 = vector.broadcast %138 : f32 to vector<2x128xf32>
    %140 = arith.mulf %139, %36 : vector<2x128xf32>
    %141 = arith.addf %126, %140 : vector<2x128xf32>
    %142 = arith.index_cast %arg0 : i32 to index
    %c8 = arith.constant 8 : index
    %143 = memref.load %arg2[%142, %c8] : memref<2x27xf32, #tpu.memory_space<smem>>
    %144 = vector.broadcast %143 : f32 to vector<2x128xf32>
    %145 = arith.mulf %144, %39 : vector<2x128xf32>
    %146 = arith.addf %131, %145 : vector<2x128xf32>
    %147 = arith.index_cast %arg0 : i32 to index
    %c17 = arith.constant 17 : index
    %148 = memref.load %arg2[%147, %c17] : memref<2x27xf32, #tpu.memory_space<smem>>
    %149 = vector.broadcast %148 : f32 to vector<2x128xf32>
    %150 = arith.mulf %149, %39 : vector<2x128xf32>
    %151 = arith.addf %136, %150 : vector<2x128xf32>
    %152 = arith.index_cast %arg0 : i32 to index
    %c26 = arith.constant 26 : index
    %153 = memref.load %arg2[%152, %c26] : memref<2x27xf32, #tpu.memory_space<smem>>
    %154 = vector.broadcast %153 : f32 to vector<2x128xf32>
    %155 = arith.mulf %154, %39 : vector<2x128xf32>
    %156 = arith.addf %141, %155 : vector<2x128xf32>
    %157 = arith.index_cast %arg0 : i32 to index
    %c0_19 = arith.constant 0 : index
    %158 = memref.load %arg2[%157, %c0_19] : memref<2x27xf32, #tpu.memory_space<smem>>
    %159 = vector.broadcast %158 : f32 to vector<2x128xf32>
    %160 = arith.addf %146, %159 : vector<2x128xf32>
    %c0_20 = arith.constant 0 : index
    %c0_21 = arith.constant 0 : index
    %c0_22 = arith.constant 0 : index
    %c0_23 = arith.constant 0 : index
    %161 = vector.load %arg4[%c0_20, %c0_21, %c0_22, %c0_23] : memref<1x3x2x128xf32, #tpu.memory_space<vmem>>, vector<1x1x2x128xf32>
    %162 = vector.shape_cast %161 : vector<1x1x2x128xf32> to vector<2x128xf32>
    %163 = vector.shape_cast %160 : vector<2x128xf32> to vector<1x1x2x128xf32>
    tpu.vector_store %arg4[%c0_20, %c0_21, %c0_22, %c0_23], %163 {strides = array<i32>} : memref<1x3x2x128xf32, #tpu.memory_space<vmem>>, vector<1x1x2x128xf32>,
    %164 = arith.index_cast %arg0 : i32 to index
    %c9 = arith.constant 9 : index
    %165 = memref.load %arg2[%164, %c9] : memref<2x27xf32, #tpu.memory_space<smem>>
    %166 = vector.broadcast %165 : f32 to vector<2x128xf32>
    %167 = arith.addf %151, %166 : vector<2x128xf32>
    %c0_24 = arith.constant 0 : index
    %c1_25 = arith.constant 1 : index
    %c0_26 = arith.constant 0 : index
    %c0_27 = arith.constant 0 : index
    %168 = vector.load %arg4[%c0_24, %c1_25, %c0_26, %c0_27] : memref<1x3x2x128xf32, #tpu.memory_space<vmem>>, vector<1x1x2x128xf32>
    %169 = vector.shape_cast %168 : vector<1x1x2x128xf32> to vector<2x128xf32>
    %170 = vector.shape_cast %167 : vector<2x128xf32> to vector<1x1x2x128xf32>
    tpu.vector_store %arg4[%c0_24, %c1_25, %c0_26, %c0_27], %170 {strides = array<i32>} : memref<1x3x2x128xf32, #tpu.memory_space<vmem>>, vector<1x1x2x128xf32>,
    %171 = arith.index_cast %arg0 : i32 to index
    %c18 = arith.constant 18 : index
    %172 = memref.load %arg2[%171, %c18] : memref<2x27xf32, #tpu.memory_space<smem>>
    %173 = vector.broadcast %172 : f32 to vector<2x128xf32>
    %174 = arith.addf %156, %173 : vector<2x128xf32>
    %c0_28 = arith.constant 0 : index
    %c2_29 = arith.constant 2 : index
    %c0_30 = arith.constant 0 : index
    %c0_31 = arith.constant 0 : index
    %175 = vector.load %arg4[%c0_28, %c2_29, %c0_30, %c0_31] : memref<1x3x2x128xf32, #tpu.memory_space<vmem>>, vector<1x1x2x128xf32>
    %176 = vector.shape_cast %175 : vector<1x1x2x128xf32> to vector<2x128xf32>
    %177 = vector.shape_cast %174 : vector<2x128xf32> to vector<1x1x2x128xf32>
    tpu.vector_store %arg4[%c0_28, %c2_29, %c0_30, %c0_31], %177 {strides = array<i32>} : memref<1x3x2x128xf32, #tpu.memory_space<vmem>>, vector<1x1x2x128xf32>,
    return
  }
  func.func @transform_0(%arg0: i32, %arg1: i32, %arg2: memref<2x27xf32, #tpu.memory_space<smem>>) -> (i32, i32, i32, i32) {
    %c0_i32 = arith.constant 0 : i32
    %c0_i32_0 = arith.constant 0 : i32
    %c0_i32_1 = arith.constant 0 : i32
    return %arg0, %c0_i32, %arg1, %c0_i32_0 : i32, i32, i32, i32
  }
  func.func @transform_1(%arg0: i32, %arg1: i32, %arg2: memref<2x27xf32, #tpu.memory_space<smem>>) -> (i32, i32, i32, i32) {
    %c0_i32 = arith.constant 0 : i32
    %c0_i32_0 = arith.constant 0 : i32
    %c0_i32_1 = arith.constant 0 : i32
    return %arg0, %c0_i32, %arg1, %c0_i32_0 : i32, i32, i32, i32
  }
}

</mosaic_0001>

<llo_original>
// kernel: tpu_custom_call.1
$region0: #{tpu_custom_call.1}
  #allocation0 [shape = 'u32[]', space=smem, size = 0x4, offset = 0x4, fixed_abs, tag = 'smem constant byte address 0x4 - core index']
  #allocation1 [shape = 'u32[144,128]{1,0:T(1,128)}', space=vmem, size = 0x12000, scoped, tag = 'internal scratch']
  #allocation2 [shape = 's32[1]{0}', space=sflag, size = 0x4, scoped, tag = 'scoped memory for tpu_custom_call.1']
  #allocation3 [shape = 'u8[1024]{0}', space=smem, size = 0x400, scoped, tag = 'prefetched SMEM operand 0']
  %s0 = inlined_call_operand.hbm [shape: f32[2,27], index: 0, kind: input, shape index: {}]
  %s1 = inlined_call_operand.hbm [shape: f32[2,3,2,128], index: 1, kind: input, shape index: {}]
  %s2 = inlined_call_operand.hbm [shape: f32[2,3,2,128], index: 2, kind: output, shape index: {}]
  %s3 = sld [smem:[#allocation0]]
  $region41: #{tpu_custom_call.1} parent=0
    _
  %s5 = ssub.s32 1, %s3
  %s6 = scalar_select 0, %s5, %s3
  %8 = dma.hbm_to_smem %s0, 32, [#allocation3], [#allocation2]
  %9 = dma.done [#allocation2], 32
  %10 = sfence
  $region1: #{tpu_custom_call.1} parent=0
    #allocation4 [shape = 'u8[6144]{0}', space=vmem, size = 0x1800, scoped, tag = 'input window, operand 1']
    #allocation5 [shape = 's32[2]{0}', space=sflag, size = 0x8, scoped, tag = 'scoped memory for tpu_custom_call.1']
    #allocation6 [shape = 's32[2]{0}', space=sflag, size = 0x8, scoped, tag = 'scoped memory for tpu_custom_call.1']
    #allocation7 [shape = 'u8[6144]{0}', space=vmem, size = 0x1800, scoped, tag = 'output window, operand 0']
    %11 = vsyncpa [#allocation5], 0
    %s12 = scalar_lea.sflag [#allocation5], 1
    %13 = vsyncpa %s12, 0
    %14 = vsyncpa [#allocation6], 0
    %s15 = scalar_lea.sflag [#allocation6], 1
    %16 = vsyncpa %s15, 0
    loop: start=0, step=1, limit=4
    $region2: #{tpu_custom_call.1} parent=1 // loop_pre_header
      _
    $region3: #{tpu_custom_call.1} parent=1 // loop_header
      %s18 = sphi 0, %s22
      %p19 = scmp.ge.s32.totalorder %s18, 4
      %s25 = sphi 0, %s37
      %s26 = sphi 0, %s33
      %s27 = sphi 0, %s25
      %s28 = sphi 0, %s26
      %s29 = sphi 0, %s27
      %s30 = sphi 0, %s28
      %s42 = sphi 0, %s44
      %s45 = sphi 0, %s42
      %s46 = sphi 0, %s45
      %s62 = sphi 0, %s46
      %s70 = sphi 0, %s72
      %s73 = sphi 0, %s70
      %s74 = sphi 0, %s73
      %s90 = sphi 0, %s74
    $region4: #{tpu_custom_call.1} parent=1 // loop_header_branch
      %21 = sbr.rel (%p19) target = $region8
    $region5: #{tpu_custom_call.1} parent=1 // loop_body
      %s23 = ssub.s32 %s18, 1
      %s24 = ssub.s32 %s18, 2
      %s31 = sadd.s32 1, %s26
      %p32 = scmp.ge.s32.totalorder %s31, 1
      %s33 = scalar_select %p32, 0, %s31
      %s34 = sadd.s32 1, %s25
      %s35 = scalar_select %p32, %s34, %s25
      %p36 = scmp.ge.s32.totalorder %s35, 2
      %s37 = scalar_select %p36, 0, %s35
      %s38 = ssub.s32 %s25, %s37
      %s39 = ssub.s32 %s26, %s33
      %s40 = sor.u32 %s38, %s39
      %p41 = scmp.eq.s32.totalorder %s40, 0
      %s43 = sadd.s32 %s42, 1
      %s44 = scalar_select %p41, %s42, %s43
      %p47 = pneg %p41
      %p48 = scmp.eq.s32.totalorder %s18, 1
      %p49 = por %p47, %p48
      %p50 = scmp.ne.s32.totalorder %s42, %s45
      %p51 = scmp.eq.s32.totalorder %s18, 0
      %p52 = por %p50, %p51
      %p53 = scmp.ne.s32.totalorder %s42, %s45
      %p54 = scmp.eq.s32.totalorder %s23, 1
      %p55 = por %p53, %p54
      %p56 = scmp.ne.s32.totalorder %s45, %s46
      %p57 = scmp.eq.s32.totalorder %s23, 0
      %p58 = por %p56, %p57
      %p59 = scmp.ne.s32.totalorder %s45, %s46
      %p60 = scmp.eq.s32.totalorder %s24, 1
      %p61 = por %p59, %p60
      %p63 = scmp.ne.s32.totalorder %s46, %s62
      %p64 = scmp.eq.s32.totalorder %s24, 0
      %p65 = por %p63, %p64
      %s66 = ssub.s32 %s25, %s37
      %s67 = ssub.s32 %s26, %s33
      %s68 = sor.u32 %s66, %s67
      %p69 = scmp.eq.s32.totalorder %s68, 0
      %s71 = sadd.s32 %s70, 1
      %s72 = scalar_select %p69, %s70, %s71
      %p75 = pneg %p69
      %p76 = scmp.eq.s32.totalorder %s18, 1
      %p77 = por %p75, %p76
      %p78 = scmp.ne.s32.totalorder %s70, %s73
      %p79 = scmp.eq.s32.totalorder %s18, 0
      %p80 = por %p78, %p79
      %p81 = scmp.ne.s32.totalorder %s70, %s73
      %p82 = scmp.eq.s32.totalorder %s23, 1
      %p83 = por %p81, %p82
      %p84 = scmp.ne.s32.totalorder %s73, %s74
      %p85 = scmp.eq.s32.totalorder %s23, 0
      %p86 = por %p84, %p85
      %p87 = scmp.ne.s32.totalorder %s73, %s74
      %p88 = scmp.eq.s32.totalorder %s24, 1
      %p89 = por %p87, %p88
      %p91 = scmp.ne.s32.totalorder %s74, %s90
      %p92 = scmp.eq.s32.totalorder %s24, 0
      %p93 = por %p91, %p92
      %p94 = scmp.le.s32.totalorder 1, %s18
      %p95 = scmp.lt.s32.totalorder %s18, 3
      %p96 = pnand %p94, %p95
      %p97 = pneg %p96
      // Predicated region
      $region9: #{tpu_custom_call.1} parent=5 // pred_check
        _
      $region10: #{tpu_custom_call.1} parent=5 // pred_check_branch
        %99 = sbr.rel (%p96) target = $region12
      $region11: #{tpu_custom_call.1} parent=5 // pred_region
        %s100 = ssub.s32 %s18, 1
      $region12: #{tpu_custom_call.1} parent=5 // pred_fallthru
        _
      %p101 = scmp.lt.s32.totalorder %s18, 2
      // Predicated region
      $region13: #{tpu_custom_call.1} parent=5 // pred_check
        %p102 = pneg %p101
      $region14: #{tpu_custom_call.1} parent=5 // pred_check_branch
        %104 = sbr.rel (%p102) target = $region16
      $region15: #{tpu_custom_call.1} parent=5 // pred_region
        // Predicated region
        $region17: #{tpu_custom_call.1} parent=15 // pred_check
          %p105 = pneg %p52
        $region18: #{tpu_custom_call.1} parent=15 // pred_check_branch
          %107 = sbr.rel (%p105) target = $region20
        $region19: #{tpu_custom_call.1} parent=15 // pred_region
          %s108 = sand.u32 %s42, 1
          %s109 = scalar_lea.sflag [#allocation5], %s108
          %s110 = sand.u32 %s42, 1
          %s111 = smul.addr %s110, 6
          %s112 = scalar_lea.vmem [#allocation4], %s111
          %s114 = ssub.s32 96, 96
          %115 = vsyncadd %s109, %s114
          %s116 = smul.addr %s25, 3
          %s117 = sadd.s32 %s26, %s116
          %s118 = smul.addr %s117, 32
          %s119 = scalar_lea.hbm %s1, %s118
          %s120 = sshll.u32 %s112, 4
          %s121 = int_to_ptr.vmem [resolvable:$true] %s120
          %126 = dma.hbm_to_vmem [thread:$0]  %s119, 96, %s121, %s109, 32, 32, 2
        $region20: #{tpu_custom_call.1} parent=15 // pred_fallthru
          _
      $region16: #{tpu_custom_call.1} parent=5 // pred_fallthru
        _
      %p127 = scmp.le.s32.totalorder 1, %s18
      %p128 = scmp.lt.s32.totalorder %s18, 3
      %p129 = pnand %p127, %p128
      %p130 = pneg %p129
      // Predicated region
      $region21: #{tpu_custom_call.1} parent=5 // pred_check
        _
      $region22: #{tpu_custom_call.1} parent=5 // pred_check_branch
        %132 = sbr.rel (%p129) target = $region24
      $region23: #{tpu_custom_call.1} parent=5 // pred_region
        %s133 = ssub.s32 %s18, 1
        %s134 = sand.u32 %s45, 1
        %s135 = scalar_lea.sflag [#allocation5], %s134
        %s136 = sand.u32 %s45, 1
        %s137 = smul.addr %s136, 6
        %s138 = scalar_lea.vmem [#allocation4], %s137
        // Predicated region
        $region25: #{tpu_custom_call.1} parent=23 // pred_check
          %p139 = pneg %p58
        $region26: #{tpu_custom_call.1} parent=23 // pred_check_branch
          %141 = sbr.rel (%p139) target = $region28
        $region27: #{tpu_custom_call.1} parent=23 // pred_region
          %142 = dma.done %s135, 96
        $region28: #{tpu_custom_call.1} parent=23 // pred_fallthru
          _
        %s143 = sand.u32 %s45, 1
        %s144 = scalar_lea.sflag [#allocation5], %s143
        %s145 = sand.u32 %s45, 1
        %s146 = smul.addr %s145, 6
        %s147 = scalar_lea.vmem [#allocation4], %s146
        %p148 = pneg %p58
        %p149 = pneg %p55
        %p150 = pneg %p86
        %p151 = pneg %p83
        %s152 = sand.u32 %s73, 1
        %s153 = scalar_lea.sflag [#allocation6], %s152
        %s154 = sand.u32 %s73, 1
        %s155 = smul.addr %s154, 6
        %s156 = scalar_lea.vmem [#allocation7], %s155
        %s157 = scalar_lea.vmem %s138, 4 [#allocation4]
        %v158 = vld [vmem:[%s157] sm:$0x3]
        %v159 = vsub.f32 %v158, 0.5
        %v160 = vmul.f32 %v159, 2.0
        %s161 = scalar_lea.vmem %s138, 2 [#allocation4]
        %v162 = vld [vmem:[%s161] sm:$0x3]
        %v163 = vsub.f32 %v162, 0.5
        %v164 = vmul.f32 %v163, 2.0
        %v165 = vld [vmem:[%s138] sm:$0x3]
        %v166 = vsub.f32 %v165, 0.5
        %v167 = vmul.f32 %v166, 2.0
        %v168 = vmul.f32 %v160, %v160
        %v169 = vmul.f32 %v164, %v164
        %v170 = vadd.f32 %v168, %v169
        %v171 = vmul.f32 %v167, %v167
        %v172 = vadd.f32 %v170, %v171
        %v173 = vmax.f32 %v172, 1e-24
        %v174 = vrsqrt.pop %v173
        %v175 = vmul.f32 %v160, %v174
        %v176 = vmul.f32 %v164, %v174
        %v177 = vmul.f32 %v167, %v174
        %v178 = vmul.f32 %v175, %v177
        %v179 = vmul.f32 %v175, %v176
        %v180 = vmul.f32 %v176, 3.0
        %v181 = vmul.f32 %v180, %v176
        %v182 = vsub.f32 %v181, 1.0
        %v183 = vmul.f32 %v176, %v177
        %v184 = vmul.f32 %v177, %v177
        %v185 = vmul.f32 %v175, %v175
        %v186 = vsub.f32 %v184, %v185
        %s187 = smul.u32 %s27, 128
        %s188 = sadd.s32 %s187, 1
        %s189 = sld [smem:[#allocation3 + %s188]]
        %v190 = vstv %s189
        %v191 = vmul.f32 %v190, %v175
        %s192 = sadd.s32 %s187, 10
        %s193 = sld [smem:[#allocation3 + %s192]]
        %v194 = vstv %s193
        %v195 = vmul.f32 %v194, %v175
        %s196 = sadd.s32 %s187, 19
        %s197 = sld [smem:[#allocation3 + %s196]]
        %v198 = vstv %s197
        %v199 = vmul.f32 %v198, %v175
        %s200 = sadd.s32 %s187, 2
        %s201 = sld [smem:[#allocation3 + %s200]]
        %v202 = vstv %s201
        %v203 = vmul.f32 %v202, %v176
        %v204 = vadd.f32 %v191, %v203
        %s205 = sadd.s32 %s187, 11
        %s206 = sld [smem:[#allocation3 + %s205]]
        %v207 = vstv %s206
        %v208 = vmul.f32 %v207, %v176
        %v209 = vadd.f32 %v195, %v208
        %s210 = sadd.s32 %s187, 20
        %s211 = sld [smem:[#allocation3 + %s210]]
        %v212 = vstv %s211
        %v213 = vmul.f32 %v212, %v176
        %v214 = vadd.f32 %v199, %v213
        %s215 = sadd.s32 %s187, 3
        %s216 = sld [smem:[#allocation3 + %s215]]
        %v217 = vstv %s216
        %v218 = vmul.f32 %v217, %v177
        %v219 = vadd.f32 %v204, %v218
        %s220 = sadd.s32 %s187, 12
        %s221 = sld [smem:[#allocation3 + %s220]]
        %v222 = vstv %s221
        %v223 = vmul.f32 %v222, %v177
        %v224 = vadd.f32 %v209, %v223
        %s225 = sadd.s32 %s187, 21
        %s226 = sld [smem:[#allocation3 + %s225]]
        %v227 = vstv %s226
        %v228 = vmul.f32 %v227, %v177
        %v229 = vadd.f32 %v214, %v228
        %s230 = sadd.s32 %s187, 4
        %s231 = sld [smem:[#allocation3 + %s230]]
        %v232 = vstv %s231
        %v233 = vmul.f32 %v232, %v178
        %v234 = vadd.f32 %v219, %v233
        %s235 = sadd.s32 %s187, 13
        %s236 = sld [smem:[#allocation3 + %s235]]
        %v237 = vstv %s236
        %v238 = vmul.f32 %v237, %v178
        %v239 = vadd.f32 %v224, %v238
        %s240 = sadd.s32 %s187, 22
        %s241 = sld [smem:[#allocation3 + %s240]]
        %v242 = vstv %s241
        %v243 = vmul.f32 %v242, %v178
        %v244 = vadd.f32 %v229, %v243
        %s245 = sadd.s32 %s187, 5
        %s246 = sld [smem:[#allocation3 + %s245]]
        %v247 = vstv %s246
        %v248 = vmul.f32 %v247, %v179
        %v249 = vadd.f32 %v234, %v248
        %s250 = sadd.s32 %s187, 14
        %s251 = sld [smem:[#allocation3 + %s250]]
        %v252 = vstv %s251
        %v253 = vmul.f32 %v252, %v179
        %v254 = vadd.f32 %v239, %v253
        %s255 = sadd.s32 %s187, 23
        %s256 = sld [smem:[#allocation3 + %s255]]
        %v257 = vstv %s256
        %v258 = vmul.f32 %v257, %v179
        %v259 = vadd.f32 %v244, %v258
        %s260 = sadd.s32 %s187, 6
        %s261 = sld [smem:[#allocation3 + %s260]]
        %v262 = vstv %s261
        %v263 = vmul.f32 %v262, %v182
        %v264 = vadd.f32 %v249, %v263
        %s265 = sadd.s32 %s187, 15
        %s266 = sld [smem:[#allocation3 + %s265]]
        %v267 = vstv %s266
        %v268 = vmul.f32 %v267, %v182
        %v269 = vadd.f32 %v254, %v268
        %s270 = sadd.s32 %s187, 24
        %s271 = sld [smem:[#allocation3 + %s270]]
        %v272 = vstv %s271
        %v273 = vmul.f32 %v272, %v182
        %v274 = vadd.f32 %v259, %v273
        %s275 = sadd.s32 %s187, 7
        %s276 = sld [smem:[#allocation3 + %s275]]
        %v277 = vstv %s276
        %v278 = vmul.f32 %v277, %v183
        %v279 = vadd.f32 %v264, %v278
        %s280 = sadd.s32 %s187, 16
        %s281 = sld [smem:[#allocation3 + %s280]]
        %v282 = vstv %s281
        %v283 = vmul.f32 %v282, %v183
        %v284 = vadd.f32 %v269, %v283
        %s285 = sadd.s32 %s187, 25
        %s286 = sld [smem:[#allocation3 + %s285]]
        %v287 = vstv %s286
        %v288 = vmul.f32 %v287, %v183
        %v289 = vadd.f32 %v274, %v288
        %s290 = sadd.s32 %s187, 8
        %s291 = sld [smem:[#allocation3 + %s290]]
        %v292 = vstv %s291
        %v293 = vmul.f32 %v292, %v186
        %v294 = vadd.f32 %v279, %v293
        %s295 = sadd.s32 %s187, 17
        %s296 = sld [smem:[#allocation3 + %s295]]
        %v297 = vstv %s296
        %v298 = vmul.f32 %v297, %v186
        %v299 = vadd.f32 %v284, %v298
        %s300 = sadd.s32 %s187, 26
        %s301 = sld [smem:[#allocation3 + %s300]]
        %v302 = vstv %s301
        %v303 = vmul.f32 %v302, %v186
        %v304 = vadd.f32 %v289, %v303
        %s305 = sld [smem:[#allocation3 + %s187]]
        %v306 = vstv %s305
        %v307 = vadd.f32 %v294, %v306
        %308 = vst [vmem:[%s156] sm:$0x3] %v307
        %s309 = sadd.s32 %s187, 9
        %s310 = sld [smem:[#allocation3 + %s309]]
        %v311 = vstv %s310
        %v312 = vadd.f32 %v299, %v311
        %s313 = scalar_lea.vmem %s156, 2 [#allocation7]
        %314 = vst [vmem:[%s313] sm:$0x3] %v312
        %s315 = sadd.s32 %s187, 18
        %s316 = sld [smem:[#allocation3 + %s315]]
        %v317 = vstv %s316
        %v318 = vadd.f32 %v304, %v317
        %s319 = scalar_lea.vmem %s156, 4 [#allocation7]
        %320 = vst [vmem:[%s319] sm:$0x3] %v318
        %s321 = sand.u32 %s73, 1
        %s322 = scalar_lea.sflag [#allocation6], %s321
        %s323 = sand.u32 %s73, 1
        %s324 = smul.addr %s323, 6
        %s325 = scalar_lea.vmem [#allocation7], %s324
        // Predicated region
        $region29: #{tpu_custom_call.1} parent=23 // pred_check
          %p326 = pneg %p83
        $region30: #{tpu_custom_call.1} parent=23 // pred_check_branch
          %328 = sbr.rel (%p326) target = $region32
        $region31: #{tpu_custom_call.1} parent=23 // pred_region
          %s330 = ssub.s32 96, 96
          %331 = vsyncadd %s322, %s330
          %s332 = smul.addr %s27, 3
          %s333 = sadd.s32 %s28, %s332
          %s334 = smul.addr %s333, 32
          %s335 = scalar_lea.hbm %s2, %s334
          %s336 = sshll.u32 %s325, 4
          %s337 = int_to_ptr.vmem [resolvable:$true] %s336
          %342 = dma.vmem_to_hbm [thread:$0]  %s337, 96, %s335, %s322, 32, 32, 2
        $region32: #{tpu_custom_call.1} parent=23 // pred_fallthru
          _
      $region24: #{tpu_custom_call.1} parent=5 // pred_fallthru
        _
      %p343 = scmp.le.s32.totalorder 2, %s18
      // Predicated region
      $region33: #{tpu_custom_call.1} parent=5 // pred_check
        %p344 = pneg %p343
      $region34: #{tpu_custom_call.1} parent=5 // pred_check_branch
        %346 = sbr.rel (%p344) target = $region36
      $region35: #{tpu_custom_call.1} parent=5 // pred_region
        %s347 = ssub.s32 %s18, 2
        // Predicated region
        $region37: #{tpu_custom_call.1} parent=35 // pred_check
          %p348 = pneg %p89
        $region38: #{tpu_custom_call.1} parent=35 // pred_check_branch
          %350 = sbr.rel (%p348) target = $region40
        $region39: #{tpu_custom_call.1} parent=35 // pred_region
          %s351 = sand.u32 %s74, 1
          %s352 = scalar_lea.sflag [#allocation6], %s351
          %s353 = sand.u32 %s74, 1
          %s354 = smul.addr %s353, 6
          %s355 = scalar_lea.vmem [#allocation7], %s354
          %356 = dma.done %s352, 96
        $region40: #{tpu_custom_call.1} parent=35 // pred_fallthru
          _
      $region36: #{tpu_custom_call.1} parent=5 // pred_fallthru
        _
    $region6: #{tpu_custom_call.1} parent=1 // loop_footer
      %s22 = sadd.s32 1, %s18
    $region7: #{tpu_custom_call.1} parent=1 // loop_footer_branch
      %17 = sbr.rel target = $region3
    $region8: #{tpu_custom_call.1} parent=1 // loop_exit
      _
    %357 = vsyncpa [#allocation5], 1
    %s358 = scalar_lea.sflag [#allocation5], 1
    %359 = vsyncpa %s358, 1
    %360 = vsyncpa [#allocation6], 1
    %s361 = scalar_lea.sflag [#allocation6], 1
    %362 = vsyncpa %s361, 1

</llo_original>
